<compile_context>
chip_gen: v7x
topology: tpu7x:2x2x1
jax: 0.10.0
libtpu: 0.0.40
codegen_flags: <defaults>
</compile_context>

<pallas_src>
import functools

import jax
import jax.numpy as jnp
from jax.experimental import pallas as pl
from jax.experimental.pallas import tpu as pltpu


# ----------------------------------------------------------------------------
# Small in-kernel helpers (flat padded layout: image at columns [off, off+HW),
# row-major p = h*W + w, >= W+1 zero columns on each side of the interior).
# ----------------------------------------------------------------------------
def _zero_borders(pad_ref, *, off, HW):
    """Zero only the two border strips; the interior is overwritten later."""
    rows, L = pad_ref.shape
    pad_ref[:, 0:off] = jnp.zeros((rows, off), jnp.float32)
    pad_ref[:, off + HW:L] = jnp.zeros((rows, L - off - HW), jnp.float32)


def _col_group(pad_ref, w_ref, row_lo, row_hi, kw, *, off, W, HW):
    """Sum of the three vertical taps for a fixed horizontal tap kw.
    pad_ref: (rows, L) scratch ref; w_ref: (9, Cout, Cin) with tap = kh*3+kw.
    Returns (Cout, HW) f32 partial sum (unmasked, no bias)."""
    g = None
    for kh in range(3):
        s = off + (kh - 1) * W + (kw - 1)
        patch = pad_ref[row_lo:row_hi, s:s + HW]           # (Cin, HW) lane shift
        t = jnp.dot(w_ref[kh * 3 + kw], patch, preferred_element_type=jnp.float32)
        g = t if g is None else g + t
    return g


def _combine(groups, mask_l, mask_r, b_ref):
    """groups = [kw==0, kw==1, kw==2] partial sums -> pre-activation."""
    return groups[1] + groups[0] * mask_l + groups[2] * mask_r + b_ref[...]


# ----------------------------------------------------------------------------
# Kernel 1: plain ConvReLU (the module spec itself), 3x3 / stride 1 / pad 1.
# ----------------------------------------------------------------------------
def _conv_relu_kernel(x_ref, w_ref, b_ref, m_ref, o_ref, pad_ref, *, W, off):
    # x_ref: (1, Cin, HW), w_ref: (9, Cout, Cin), b_ref: (Cout, 1),
    # m_ref: (2, HW), o_ref: (1, Cout, HW), pad_ref: (Cin, L) VMEM scratch.
    HW = o_ref.shape[2]
    Cin = x_ref.shape[1]

    _zero_borders(pad_ref, off=off, HW=HW)
    pad_ref[0:Cin, off:off + HW] = x_ref[0]                # lane-aligned interior

    groups = [_col_group(pad_ref, w_ref, 0, Cin, kw, off=off, W=W, HW=HW)
              for kw in range(3)]
    acc = _combine(groups, m_ref[0:1, :], m_ref[1:2, :], b_ref)
    o_ref[...] = jnp.maximum(acc, 0.0)[None].astype(o_ref.dtype)


# ----------------------------------------------------------------------------
# Kernel 2: fused VDNet dense block = two ConvReLU applications, x1 in VMEM.
# conv2's weights arrive pre-split: w2a over cat1 channels, w2b over x1.
# ----------------------------------------------------------------------------
def _fused_dense2_kernel(d1_ref, c1_ref, c2_ref, x_ref,
                         w1_ref, b1_ref, w2a_ref, w2b_ref, b2_ref, m_ref,
                         o_ref, pad_ref, *, W, off):
    HW = o_ref.shape[2]
    C = x_ref.shape[1]
    Cin1 = 4 * C
    Cout1 = w2b_ref.shape[2]
    Cin2 = Cin1 + Cout1
    mask_l = m_ref[0:1, :]
    mask_r = m_ref[1:2, :]

    _zero_borders(pad_ref, off=off, HW=HW)
    # cat([d1, c1, c2, x], dim=1) folded into the scratch fill (no HBM concat).
    pad_ref[0 * C:1 * C, off:off + HW] = d1_ref[0]
    pad_ref[1 * C:2 * C, off:off + HW] = c1_ref[0]
    pad_ref[2 * C:3 * C, off:off + HW] = c2_ref[0]
    pad_ref[3 * C:4 * C, off:off + HW] = x_ref[0]

    # Phase 1: shared tap loads over the cat1 rows feed BOTH conv1 and the
    # cat1 part of conv2 (each shifted patch is read once, matmul'd twice).
    g1 = [None, None, None]
    g2 = [None, None, None]
    for kw in range(3):
        a = b = None
        for kh in range(3):
            s = off + (kh - 1) * W + (kw - 1)
            patch = pad_ref[0:Cin1, s:s + HW]              # (Cin1, HW)
            t1 = jnp.dot(w1_ref[kh * 3 + kw], patch,
                         preferred_element_type=jnp.float32)
            t2 = jnp.dot(w2a_ref[kh * 3 + kw], patch,
                         preferred_element_type=jnp.float32)
            a = t1 if a is None else a + t1
            b = t2 if b is None else b + t2
        g1[kw] = a
        g2[kw] = b

    # x1 = relu(conv1(cat1)), kept entirely in VMEM; append as cat2 channels.
    x1 = jnp.maximum(_combine(g1, mask_l, mask_r, b1_ref), 0.0)
    pad_ref[Cin1:Cin2, off:off + HW] = x1

    # Phase 2: add the x1-channel contribution of conv2.
    for kw in range(3):
        h = _col_group(pad_ref, w2b_ref, Cin1, Cin2, kw, off=off, W=W, HW=HW)
        g2[kw] = g2[kw] + h

    x2 = jnp.maximum(_combine(g2, mask_l, mask_r, b2_ref), 0.0)
    o_ref[...] = x2[None].astype(o_ref.dtype)


# ----------------------------------------------------------------------------
# Wrappers (NCHW in / NCHW out; no pad / concat / transpose in HBM)
# ----------------------------------------------------------------------------
def _prep_weight(w_oihw):
    # (Cout, Cin, 3, 3) -> (9, Cout, Cin), tap index = kh*3+kw
    cout, cin, kh, kw = w_oihw.shape
    assert (kh, kw) == (3, 3)
    return jnp.transpose(w_oihw, (2, 3, 0, 1)).reshape(9, cout, cin).astype(jnp.float32)


def _edge_masks(H, W):
    col = jnp.arange(H * W, dtype=jnp.int32) % W
    ml = (col != 0).astype(jnp.float32)        # valid where left neighbor exists
    mr = (col != W - 1).astype(jnp.float32)    # valid where right neighbor exists
    return jnp.stack([ml, mr], axis=0)         # (2, H*W)


def _interior_offset(W):
    # >= W+1 zero columns on each side, rounded up to 128 for aligned stores.
    return ((W + 1 + 127) // 128) * 128


def conv3x3_relu(x, w_oihw, b):
    """ConvReLU forward: relu(conv2d(x, w, b, kernel=3, stride=1, padding=1))."""
    N, Cin, H, W = x.shape
    Cout = w_oihw.shape[0]
    HW = H * W
    off = _interior_offset(W)
    L = HW + 2 * off
    kern = functools.partial(_conv_relu_kernel, W=W, off=off)

    out = pl.pallas_call(
        kern,
        out_shape=jax.ShapeDtypeStruct((N, Cout, HW), jnp.float32),
        grid_spec=pltpu.PrefetchScalarGridSpec(
            num_scalar_prefetch=0,
            grid=(N,),
            in_specs=[
                pl.BlockSpec((1, Cin, HW), lambda n: (n, 0, 0)),
                pl.BlockSpec((9, Cout, Cin), lambda n: (0, 0, 0)),
                pl.BlockSpec((Cout, 1), lambda n: (0, 0)),
                pl.BlockSpec((2, HW), lambda n: (0, 0)),
            ],
            out_specs=pl.BlockSpec((1, Cout, HW), lambda n: (n, 0, 0)),
            scratch_shapes=[pltpu.VMEM((Cin, L), jnp.float32)],
        ),
        compiler_params=pltpu.CompilerParams(dimension_semantics=("parallel",)),
    )(x.reshape(N, Cin, HW).astype(jnp.float32),
      _prep_weight(w_oihw),
      b.reshape(Cout, 1).astype(jnp.float32),
      _edge_masks(H, W))
    return out.reshape(N, Cout, H, W)


def two_conv_relu_dense2(x, c1, c2, d1, params):
    """Fused: relu(conv2(cat([d1,c1,c2,x, relu(conv1(cat([d1,c1,c2,x])))])))."""
    N, C, H, W = x.shape
    HW = H * W
    w1, b1 = params["w1_oihw"], params["b1"]
    w2, b2 = params["w2_oihw"], params["b2"]
    cout1, cin1 = w1.shape[0], w1.shape[1]
    cout2, cin2 = w2.shape[0], w2.shape[1]
    assert cin1 == 4 * C and cin2 == cin1 + cout1

    # Split conv2's weights: cat1 channels vs x1 channels (free in the wrapper).
    w2a = w2[:, :cin1]                       # (cout2, cin1, 3, 3)
    w2b = w2[:, cin1:]                       # (cout2, cout1, 3, 3)

    off = _interior_offset(W)
    L = HW + 2 * off
    kern = functools.partial(_fused_dense2_kernel, W=W, off=off)

    flat = lambda t: t.reshape(N, C, HW).astype(jnp.float32)
    act_spec = pl.BlockSpec((1, C, HW), lambda n: (n, 0, 0))

    out = pl.pallas_call(
        kern,
        out_shape=jax.ShapeDtypeStruct((N, cout2, HW), jnp.float32),
        grid_spec=pltpu.PrefetchScalarGridSpec(
            num_scalar_prefetch=0,
            grid=(N,),
            in_specs=[
                act_spec, act_spec, act_spec, act_spec,          # d1, c1, c2, x
                pl.BlockSpec((9, cout1, cin1), lambda n: (0, 0, 0)),
                pl.BlockSpec((cout1, 1), lambda n: (0, 0)),
                pl.BlockSpec((9, cout2, cin1), lambda n: (0, 0, 0)),
                pl.BlockSpec((9, cout2, cout1), lambda n: (0, 0, 0)),
                pl.BlockSpec((cout2, 1), lambda n: (0, 0)),
                pl.BlockSpec((2, HW), lambda n: (0, 0)),
            ],
            out_specs=pl.BlockSpec((1, cout2, HW), lambda n: (n, 0, 0)),
            scratch_shapes=[pltpu.VMEM((cin2, L), jnp.float32)],
        ),
        compiler_params=pltpu.CompilerParams(dimension_semantics=("parallel",)),
    )(flat(d1), flat(c1), flat(c2), flat(x),
      _prep_weight(w1), b1.reshape(cout1, 1).astype(jnp.float32),
      _prep_weight(w2a), _prep_weight(w2b),
      b2.reshape(cout2, 1).astype(jnp.float32),
      _edge_masks(H, W))
    return out.reshape(N, cout2, H, W)


# ----------------------------------------------------------------------------
# Pure-JAX references
# ----------------------------------------------------------------------------
def _conv_relu_ref(x, w_oihw, b):
    out = jax.lax.conv_general_dilated(
        x, w_oihw, window_strides=(1, 1), padding=((1, 1), (1, 1)),
        dimension_numbers=("NCHW", "OIHW", "NCHW"))
    return jnp.maximum(out + b.reshape(1, -1, 1, 1), 0.0)


def _dense2_ref(x, c1, c2, d1, params):
    cat1 = jnp.concatenate([d1, c1, c2, x], axis=1)
    x1 = _conv_relu_ref(cat1, params["w1_oihw"], params["b1"])
    cat2 = jnp.concatenate([cat1, x1], axis=1)
    return _conv_relu_ref(cat2, params["w2_oihw"], params["b2"])


if __name__ == "__main__":
    N, C, H, W = 2, 4, 16, 16
    out_channels = 8
    cin1 = 4 * C
    cin2 = cin1 + out_channels

    key = jax.random.PRNGKey(0)
    kx, kc1, kc2, kd1, kw1, kb1, kw2, kb2 = jax.random.split(key, 8)
    x = jax.random.normal(kx, (N, C, H, W), jnp.float32)
    c1 = jax.random.normal(kc1, (N, C, H, W), jnp.float32)
    c2 = jax.random.normal(kc2, (N, C, H, W), jnp.float32)
    d1 = jax.random.normal(kd1, (N, C, H, W), jnp.float32)

    w1 = 0.1 * jax.random.normal(kw1, (out_channels, cin1, 3, 3), jnp.float32)
    b1 = 0.1 * jax.random.normal(kb1, (out_channels,), jnp.float32)
    w2 = 0.1 * jax.random.normal(kw2, (out_channels, cin2, 3, 3), jnp.float32)
    b2 = 0.1 * jax.random.normal(kb2, (out_channels,), jnp.float32)
    params = {"w1_oihw": w1, "b1": b1, "w2_oihw": w2, "b2": b2}

    # 1) The ConvReLU module itself (3x3, stride=1, padding=1) on x.
    w0 = 0.1 * jax.random.normal(kw1, (out_channels, C, 3, 3), jnp.float32)
    b0 = 0.1 * jax.random.normal(kb1, (out_channels,), jnp.float32)
    y = jax.block_until_ready(conv3x3_relu(x, w0, b0))
    y_ref = jax.block_until_ready(_conv_relu_ref(x, w0, b0))
    assert y.shape == (N, out_channels, H, W), y.shape
    assert jnp.allclose(y, y_ref, atol=1e-4, rtol=1e-4), \
        float(jnp.max(jnp.abs(y - y_ref)))

    # 2) The fused VDNet dense block (two ConvReLU applications, x1 in VMEM).
    out = jax.block_until_ready(two_conv_relu_dense2(x, c1, c2, d1, params))
    ref = jax.block_until_ready(_dense2_ref(x, c1, c2, d1, params))
    assert out.shape == (N, out_channels, H, W), out.shape
    assert jnp.allclose(out, ref, atol=1e-4, rtol=1e-4), \
        float(jnp.max(jnp.abs(out - ref)))

    print("KERNEL_OK")
</pallas_src>

<mosaic_0001>
module attributes {stable_mosaic.version = 11 : i64} {
  func.func @_conv_relu_kernel(%arg0: i32, %arg1: memref<1x4x256xf32, #tpu.memory_space<vmem>>, %arg2: memref<9x8x4xf32, #tpu.memory_space<vmem>>, %arg3: memref<8x1xf32, #tpu.memory_space<vmem>>, %arg4: memref<2x256xf32, #tpu.memory_space<vmem>>, %arg5: memref<1x8x256xf32, #tpu.memory_space<vmem>>, %arg6: memref<4x512xf32, #tpu.memory_space<vmem>>) attributes {dimension_semantics = [#tpu.dimension_semantics<parallel>], iteration_bounds = array<i64: 2>, scalar_prefetch = 0 : i64, scratch_operands = 1 : i64, tpu.core_type = #tpu.core_type<tc>, window_params = [{transform_indices = @transform_0, window_bounds = array<i64: 1, 4, 256>}, {pipeline_mode = #tpu.pipeline_mode<synchronous>, transform_indices = @transform_1, window_bounds = array<i64: 9, 8, 4>}, {pipeline_mode = #tpu.pipeline_mode<synchronous>, transform_indices = @transform_2, window_bounds = array<i64: 8, 1>}, {pipeline_mode = #tpu.pipeline_mode<synchronous>, transform_indices = @transform_3, window_bounds = array<i64: 2, 256>}, {transform_indices = @transform_4, window_bounds = array<i64: 1, 8, 256>}]} {
    %cst = arith.constant 0.000000e+00 : f32
    %0 = vector.broadcast %cst : f32 to vector<4x128xf32>
    %c0 = arith.constant 0 : index
    %c0_0 = arith.constant 0 : index
    %1 = vector.load %arg6[%c0, %c0_0] : memref<4x512xf32, #tpu.memory_space<vmem>>, vector<4x128xf32>
    tpu.vector_store %arg6[%c0, %c0_0], %0 {strides = array<i32>} : memref<4x512xf32, #tpu.memory_space<vmem>>, vector<4x128xf32>,
    %cst_1 = arith.constant 0.000000e+00 : f32
    %2 = vector.broadcast %cst_1 : f32 to vector<4x128xf32>
    %c0_2 = arith.constant 0 : index
    %c384 = arith.constant 384 : index
    %3 = vector.load %arg6[%c0_2, %c384] : memref<4x512xf32, #tpu.memory_space<vmem>>, vector<4x128xf32>
    tpu.vector_store %arg6[%c0_2, %c384], %2 {strides = array<i32>} : memref<4x512xf32, #tpu.memory_space<vmem>>, vector<4x128xf32>,
    %c0_3 = arith.constant 0 : index
    %c0_4 = arith.constant 0 : index
    %c0_5 = arith.constant 0 : index
    %4 = vector.load %arg1[%c0_3, %c0_4, %c0_5] : memref<1x4x256xf32, #tpu.memory_space<vmem>>, vector<1x4x256xf32>
    %5 = vector.shape_cast %4 : vector<1x4x256xf32> to vector<4x256xf32>
    %c0_6 = arith.constant 0 : index
    %c128 = arith.constant 128 : index
    %6 = vector.load %arg6[%c0_6, %c128] : memref<4x512xf32, #tpu.memory_space<vmem>>, vector<4x256xf32>
    tpu.vector_store %arg6[%c0_6, %c128], %5 {strides = array<i32>} : memref<4x512xf32, #tpu.memory_space<vmem>>, vector<4x256xf32>,
    %c0_7 = arith.constant 0 : index
    %c111 = arith.constant 111 : index
    %7 = vector.load %arg6[%c0_7, %c111] : memref<4x512xf32, #tpu.memory_space<vmem>>, vector<4x256xf32>
    %c0_8 = arith.constant 0 : index
    %c0_9 = arith.constant 0 : index
    %c0_10 = arith.constant 0 : index
    %8 = vector.load %arg2[%c0_8, %c0_9, %c0_10] : memref<9x8x4xf32, #tpu.memory_space<vmem>>, vector<1x8x4xf32>
    %9 = vector.shape_cast %8 : vector<1x8x4xf32> to vector<8x4xf32>
    %cst_11 = arith.constant dense<0.000000e+00> : vector<8x256xf32>
    %10 = tpu.matmul %9, %7, %cst_11 {dimension_numbers = #tpu.dot_dimension_numbers<[1], [0], [0], [1], [0, 0, 1, 1], [], []>} : vector<8x4xf32>, vector<4x256xf32>, vector<8x256xf32> -> vector<8x256xf32>
    %c0_12 = arith.constant 0 : index
    %c127 = arith.constant 127 : index
    %11 = vector.load %arg6[%c0_12, %c127] : memref<4x512xf32, #tpu.memory_space<vmem>>, vector<4x256xf32>
    %c3 = arith.constant 3 : index
    %c0_13 = arith.constant 0 : index
    %c0_14 = arith.constant 0 : index
    %12 = vector.load %arg2[%c3, %c0_13, %c0_14] : memref<9x8x4xf32, #tpu.memory_space<vmem>>, vector<1x8x4xf32>
    %13 = vector.shape_cast %12 : vector<1x8x4xf32> to vector<8x4xf32>
    %cst_15 = arith.constant dense<0.000000e+00> : vector<8x256xf32>
    %14 = tpu.matmul %13, %11, %cst_15 {dimension_numbers = #tpu.dot_dimension_numbers<[1], [0], [0], [1], [0, 0, 1, 1], [], []>} : vector<8x4xf32>, vector<4x256xf32>, vector<8x256xf32> -> vector<8x256xf32>
    %15 = arith.addf %10, %14 : vector<8x256xf32>
    %c0_16 = arith.constant 0 : index
    %c143 = arith.constant 143 : index
    %16 = vector.load %arg6[%c0_16, %c143] : memref<4x512xf32, #tpu.memory_space<vmem>>, vector<4x256xf32>
    %c6 = arith.constant 6 : index
    %c0_17 = arith.constant 0 : index
    %c0_18 = arith.constant 0 : index
    %17 = vector.load %arg2[%c6, %c0_17, %c0_18] : memref<9x8x4xf32, #tpu.memory_space<vmem>>, vector<1x8x4xf32>
    %18 = vector.shape_cast %17 : vector<1x8x4xf32> to vector<8x4xf32>
    %cst_19 = arith.constant dense<0.000000e+00> : vector<8x256xf32>
    %19 = tpu.matmul %18, %16, %cst_19 {dimension_numbers = #tpu.dot_dimension_numbers<[1], [0], [0], [1], [0, 0, 1, 1], [], []>} : vector<8x4xf32>, vector<4x256xf32>, vector<8x256xf32> -> vector<8x256xf32>
    %20 = arith.addf %15, %19 : vector<8x256xf32>
    %c0_20 = arith.constant 0 : index
    %c112 = arith.constant 112 : index
    %21 = vector.load %arg6[%c0_20, %c112] : memref<4x512xf32, #tpu.memory_space<vmem>>, vector<4x256xf32>
    %c1 = arith.constant 1 : index
    %c0_21 = arith.constant 0 : index
    %c0_22 = arith.constant 0 : index
    %22 = vector.load %arg2[%c1, %c0_21, %c0_22] : memref<9x8x4xf32, #tpu.memory_space<vmem>>, vector<1x8x4xf32>
    %23 = vector.shape_cast %22 : vector<1x8x4xf32> to vector<8x4xf32>
    %cst_23 = arith.constant dense<0.000000e+00> : vector<8x256xf32>
    %24 = tpu.matmul %23, %21, %cst_23 {dimension_numbers = #tpu.dot_dimension_numbers<[1], [0], [0], [1], [0, 0, 1, 1], [], []>} : vector<8x4xf32>, vector<4x256xf32>, vector<8x256xf32> -> vector<8x256xf32>
    %c0_24 = arith.constant 0 : index
    %c128_25 = arith.constant 128 : index
    %25 = vector.load %arg6[%c0_24, %c128_25] : memref<4x512xf32, #tpu.memory_space<vmem>>, vector<4x256xf32>
    %c4 = arith.constant 4 : index
    %c0_26 = arith.constant 0 : index
    %c0_27 = arith.constant 0 : index
    %26 = vector.load %arg2[%c4, %c0_26, %c0_27] : memref<9x8x4xf32, #tpu.memory_space<vmem>>, vector<1x8x4xf32>
    %27 = vector.shape_cast %26 : vector<1x8x4xf32> to vector<8x4xf32>
    %cst_28 = arith.constant dense<0.000000e+00> : vector<8x256xf32>
    %28 = tpu.matmul %27, %25, %cst_28 {dimension_numbers = #tpu.dot_dimension_numbers<[1], [0], [0], [1], [0, 0, 1, 1], [], []>} : vector<8x4xf32>, vector<4x256xf32>, vector<8x256xf32> -> vector<8x256xf32>
    %29 = arith.addf %24, %28 : vector<8x256xf32>
    %c0_29 = arith.constant 0 : index
    %c144 = arith.constant 144 : index
    %30 = vector.load %arg6[%c0_29, %c144] : memref<4x512xf32, #tpu.memory_space<vmem>>, vector<4x256xf32>
    %c7 = arith.constant 7 : index
    %c0_30 = arith.constant 0 : index
    %c0_31 = arith.constant 0 : index
    %31 = vector.load %arg2[%c7, %c0_30, %c0_31] : memref<9x8x4xf32, #tpu.memory_space<vmem>>, vector<1x8x4xf32>
    %32 = vector.shape_cast %31 : vector<1x8x4xf32> to vector<8x4xf32>
    %cst_32 = arith.constant dense<0.000000e+00> : vector<8x256xf32>
    %33 = tpu.matmul %32, %30, %cst_32 {dimension_numbers = #tpu.dot_dimension_numbers<[1], [0], [0], [1], [0, 0, 1, 1], [], []>} : vector<8x4xf32>, vector<4x256xf32>, vector<8x256xf32> -> vector<8x256xf32>
    %34 = arith.addf %29, %33 : vector<8x256xf32>
    %c0_33 = arith.constant 0 : index
    %c113 = arith.constant 113 : index
    %35 = vector.load %arg6[%c0_33, %c113] : memref<4x512xf32, #tpu.memory_space<vmem>>, vector<4x256xf32>
    %c2 = arith.constant 2 : index
    %c0_34 = arith.constant 0 : index
    %c0_35 = arith.constant 0 : index
    %36 = vector.load %arg2[%c2, %c0_34, %c0_35] : memref<9x8x4xf32, #tpu.memory_space<vmem>>, vector<1x8x4xf32>
    %37 = vector.shape_cast %36 : vector<1x8x4xf32> to vector<8x4xf32>
    %cst_36 = arith.constant dense<0.000000e+00> : vector<8x256xf32>
    %38 = tpu.matmul %37, %35, %cst_36 {dimension_numbers = #tpu.dot_dimension_numbers<[1], [0], [0], [1], [0, 0, 1, 1], [], []>} : vector<8x4xf32>, vector<4x256xf32>, vector<8x256xf32> -> vector<8x256xf32>
    %c0_37 = arith.constant 0 : index
    %c129 = arith.constant 129 : index
    %39 = vector.load %arg6[%c0_37, %c129] : memref<4x512xf32, #tpu.memory_space<vmem>>, vector<4x256xf32>
    %c5 = arith.constant 5 : index
    %c0_38 = arith.constant 0 : index
    %c0_39 = arith.constant 0 : index
    %40 = vector.load %arg2[%c5, %c0_38, %c0_39] : memref<9x8x4xf32, #tpu.memory_space<vmem>>, vector<1x8x4xf32>
    %41 = vector.shape_cast %40 : vector<1x8x4xf32> to vector<8x4xf32>
    %cst_40 = arith.constant dense<0.000000e+00> : vector<8x256xf32>
    %42 = tpu.matmul %41, %39, %cst_40 {dimension_numbers = #tpu.dot_dimension_numbers<[1], [0], [0], [1], [0, 0, 1, 1], [], []>} : vector<8x4xf32>, vector<4x256xf32>, vector<8x256xf32> -> vector<8x256xf32>
    %43 = arith.addf %38, %42 : vector<8x256xf32>
    %c0_41 = arith.constant 0 : index
    %c145 = arith.constant 145 : index
    %44 = vector.load %arg6[%c0_41, %c145] : memref<4x512xf32, #tpu.memory_space<vmem>>, vector<4x256xf32>
    %c8 = arith.constant 8 : index
    %c0_42 = arith.constant 0 : index
    %c0_43 = arith.constant 0 : index
    %45 = vector.load %arg2[%c8, %c0_42, %c0_43] : memref<9x8x4xf32, #tpu.memory_space<vmem>>, vector<1x8x4xf32>
    %46 = vector.shape_cast %45 : vector<1x8x4xf32> to vector<8x4xf32>
    %cst_44 = arith.constant dense<0.000000e+00> : vector<8x256xf32>
    %47 = tpu.matmul %46, %44, %cst_44 {dimension_numbers = #tpu.dot_dimension_numbers<[1], [0], [0], [1], [0, 0, 1, 1], [], []>} : vector<8x4xf32>, vector<4x256xf32>, vector<8x256xf32> -> vector<8x256xf32>
    %48 = arith.addf %43, %47 : vector<8x256xf32>
    %c0_45 = arith.constant 0 : index
    %c0_46 = arith.constant 0 : index
    %49 = vector.load %arg4[%c0_45, %c0_46] : memref<2x256xf32, #tpu.memory_space<vmem>>, vector<1x256xf32>
    %c1_47 = arith.constant 1 : index
    %c0_48 = arith.constant 0 : index
    %50 = vector.load %arg4[%c1_47, %c0_48] : memref<2x256xf32, #tpu.memory_space<vmem>>, vector<1x256xf32>
    %51 = vector.broadcast %49 : vector<1x256xf32> to vector<8x256xf32>
    %52 = arith.mulf %20, %51 : vector<8x256xf32>
    %53 = arith.addf %34, %52 : vector<8x256xf32>
    %54 = vector.broadcast %50 : vector<1x256xf32> to vector<8x256xf32>
    %55 = arith.mulf %48, %54 : vector<8x256xf32>
    %56 = arith.addf %53, %55 : vector<8x256xf32>
    %c0_49 = arith.constant 0 : index
    %c0_50 = arith.constant 0 : index
    %57 = vector.load %arg3[%c0_49, %c0_50] : memref<8x1xf32, #tpu.memory_space<vmem>>, vector<8x1xf32>
    %58 = vector.broadcast %57 : vector<8x1xf32> to vector<8x256xf32>
    %59 = arith.addf %56, %58 : vector<8x256xf32>
    %cst_51 = arith.constant 0.000000e+00 : f32
    %60 = vector.broadcast %cst_51 : f32 to vector<8x256xf32>
    %61 = arith.maximumf %59, %60 : vector<8x256xf32>
    %62 = vector.shape_cast %61 : vector<8x256xf32> to vector<1x8x256xf32>
    %c0_52 = arith.constant 0 : index
    %c0_53 = arith.constant 0 : index
    %c0_54 = arith.constant 0 : index
    %63 = vector.load %arg5[%c0_52, %c0_53, %c0_54] : memref<1x8x256xf32, #tpu.memory_space<vmem>>, vector<1x8x256xf32>
    tpu.vector_store %arg5[%c0_52, %c0_53, %c0_54], %62 {strides = array<i32>} : memref<1x8x256xf32, #tpu.memory_space<vmem>>, vector<1x8x256xf32>,
    return
  }
  func.func @transform_0(%arg0: i32) -> (i32, i32, i32) {
    %c0_i32 = arith.constant 0 : i32
    %c0_i32_0 = arith.constant 0 : i32
    %c0_i32_1 = arith.constant 0 : i32
    return %arg0, %c0_i32, %c0_i32_0 : i32, i32, i32
  }
  func.func @transform_1(%arg0: i32) -> (i32, i32, i32) {
    %c0_i32 = arith.constant 0 : i32
    %c0_i32_0 = arith.constant 0 : i32
    %c0_i32_1 = arith.constant 0 : i32
    %c0_i32_2 = arith.constant 0 : i32
    return %c0_i32, %c0_i32_0, %c0_i32_1 : i32, i32, i32
  }
  func.func @transform_2(%arg0: i32) -> (i32, i32) {
    %c0_i32 = arith.constant 0 : i32
    %c0_i32_0 = arith.constant 0 : i32
    %c0_i32_1 = arith.constant 0 : i32
    return %c0_i32, %c0_i32_0 : i32, i32
  }
  func.func @transform_3(%arg0: i32) -> (i32, i32) {
    %c0_i32 = arith.constant 0 : i32
    %c0_i32_0 = arith.constant 0 : i32
    %c0_i32_1 = arith.constant 0 : i32
    return %c0_i32, %c0_i32_0 : i32, i32
  }
  func.func @transform_4(%arg0: i32) -> (i32, i32, i32) {
    %c0_i32 = arith.constant 0 : i32
    %c0_i32_0 = arith.constant 0 : i32
    %c0_i32_1 = arith.constant 0 : i32
    return %arg0, %c0_i32, %c0_i32_0 : i32, i32, i32
  }
}

</mosaic_0001>

<llo_original>
// kernel: tpu_custom_call.1
$region0: #{tpu_custom_call.1}
  #allocation0 [shape = 'u32[]', space=smem, size = 0x4, offset = 0x4, fixed_abs, tag = 'smem constant byte address 0x4 - core index']
  #allocation1 [shape = 'u32[144,128]{1,0:T(1,128)}', space=vmem, size = 0x12000, scoped, tag = 'internal scratch']
  #allocation2 [shape = 'f32[4,512]{1,0:T(4,128)}', space=vmem, size = 0x2000, scoped, tag = 'scratch operand']
  %s0 = inlined_call_operand.vmem [shape: f32[2,4,256], index: 0, kind: input, shape index: {}]
  %s1 = inlined_call_operand.vmem [shape: f32[9,8,4], index: 1, kind: input, shape index: {}]
  %s2 = inlined_call_operand.vmem [shape: f32[8,1], index: 2, kind: input, shape index: {}]
  %s3 = inlined_call_operand.vmem [shape: f32[2,256], index: 3, kind: input, shape index: {}]
  %s4 = inlined_call_operand.hbm [shape: f32[2,8,256], index: 4, kind: output, shape index: {}]
  %s5 = sld [smem:[#allocation0]]
  $region49: #{tpu_custom_call.1} parent=0
    _
  %s7 = ssub.s32 1, %s5
  %s8 = scalar_select 0, %s7, %s5
  $region1: #{tpu_custom_call.1} parent=0
    #allocation3 [shape = 'u8[16384]{0}', space=vmem, size = 0x4000, scoped, tag = 'output window, operand 0']
    #allocation4 [shape = 's32[2]{0}', space=sflag, size = 0x8, scoped, tag = 'scoped memory for tpu_custom_call.1']
    %9 = vsyncpa [#allocation4], 0
    %s10 = scalar_lea.sflag [#allocation4], 1
    %11 = vsyncpa %s10, 0
    loop: start=0, step=1, limit=4
    $region2: #{tpu_custom_call.1} parent=1 // loop_pre_header
      _
    $region3: #{tpu_custom_call.1} parent=1 // loop_header
      %s13 = sphi 0, %s17
      %p14 = scmp.ge.s32.totalorder %s13, 4
      %s23 = sphi 0, %s25
      %s26 = sphi 0, %s23
      %s27 = sphi 0, %s26
      %s43 = sphi 0, %s27
      %s47 = sphi 0, %s47
      %s49 = sphi 0, %s47
      %s50 = sphi 0, %s49
      %s64 = sphi 0, %s50
      %s68 = sphi 0, %s68
      %s70 = sphi 0, %s68
      %s71 = sphi 0, %s70
      %s85 = sphi 0, %s71
      %s89 = sphi 0, %s89
      %s91 = sphi 0, %s89
      %s92 = sphi 0, %s91
      %s106 = sphi 0, %s92
      %s112 = sphi 0, %s114
      %s115 = sphi 0, %s112
      %s116 = sphi 0, %s115
      %s132 = sphi 0, %s116
    $region4: #{tpu_custom_call.1} parent=1 // loop_header_branch
      %16 = sbr.rel (%p14) target = $region8
    $region5: #{tpu_custom_call.1} parent=1 // loop_body
      %s18 = ssub.s32 %s13, 1
      %s19 = ssub.s32 %s13, 2
      %s20 = sadd.s32 %s13, 1
      %s21 = ssub.s32 %s13, %s20
      %p22 = scmp.eq.s32.totalorder %s21, 0
      %s24 = sadd.s32 %s23, 1
      %s25 = scalar_select %p22, %s23, %s24
      %p28 = pneg %p22
      %p29 = scmp.eq.s32.totalorder %s13, 1
      %p30 = por %p28, %p29
      %p31 = scmp.ne.s32.totalorder %s23, %s26
      %p32 = scmp.eq.s32.totalorder %s13, 0
      %p33 = por %p31, %p32
      %p34 = scmp.ne.s32.totalorder %s23, %s26
      %p35 = scmp.eq.s32.totalorder %s18, 1
      %p36 = por %p34, %p35
      %p37 = scmp.ne.s32.totalorder %s26, %s27
      %p38 = scmp.eq.s32.totalorder %s18, 0
      %p39 = por %p37, %p38
      %p40 = scmp.ne.s32.totalorder %s26, %s27
      %p41 = scmp.eq.s32.totalorder %s19, 1
      %p42 = por %p40, %p41
      %p44 = scmp.ne.s32.totalorder %s27, %s43
      %p45 = scmp.eq.s32.totalorder %s19, 0
      %p46 = por %p44, %p45
      %s48 = sadd.s32 %s47, 1
      %p51 = scmp.eq.s32.totalorder %s13, 1
      %p52 = scmp.ne.s32.totalorder %s47, %s49
      %p53 = scmp.eq.s32.totalorder %s13, 0
      %p54 = por %p52, %p53
      %p55 = scmp.ne.s32.totalorder %s47, %s49
      %p56 = scmp.eq.s32.totalorder %s18, 1
      %p57 = por %p55, %p56
      %p58 = scmp.ne.s32.totalorder %s49, %s50
      %p59 = scmp.eq.s32.totalorder %s18, 0
      %p60 = por %p58, %p59
      %p61 = scmp.ne.s32.totalorder %s49, %s50
      %p62 = scmp.eq.s32.totalorder %s19, 1
      %p63 = por %p61, %p62
      %p65 = scmp.ne.s32.totalorder %s50, %s64
      %p66 = scmp.eq.s32.totalorder %s19, 0
      %p67 = por %p65, %p66
      %s69 = sadd.s32 %s68, 1
      %p72 = scmp.eq.s32.totalorder %s13, 1
      %p73 = scmp.ne.s32.totalorder %s68, %s70
      %p74 = scmp.eq.s32.totalorder %s13, 0
      %p75 = por %p73, %p74
      %p76 = scmp.ne.s32.totalorder %s68, %s70
      %p77 = scmp.eq.s32.totalorder %s18, 1
      %p78 = por %p76, %p77
      %p79 = scmp.ne.s32.totalorder %s70, %s71
      %p80 = scmp.eq.s32.totalorder %s18, 0
      %p81 = por %p79, %p80
      %p82 = scmp.ne.s32.totalorder %s70, %s71
      %p83 = scmp.eq.s32.totalorder %s19, 1
      %p84 = por %p82, %p83
      %p86 = scmp.ne.s32.totalorder %s71, %s85
      %p87 = scmp.eq.s32.totalorder %s19, 0
      %p88 = por %p86, %p87
      %s90 = sadd.s32 %s89, 1
      %p93 = scmp.eq.s32.totalorder %s13, 1
      %p94 = scmp.ne.s32.totalorder %s89, %s91
      %p95 = scmp.eq.s32.totalorder %s13, 0
      %p96 = por %p94, %p95
      %p97 = scmp.ne.s32.totalorder %s89, %s91
      %p98 = scmp.eq.s32.totalorder %s18, 1
      %p99 = por %p97, %p98
      %p100 = scmp.ne.s32.totalorder %s91, %s92
      %p101 = scmp.eq.s32.totalorder %s18, 0
      %p102 = por %p100, %p101
      %p103 = scmp.ne.s32.totalorder %s91, %s92
      %p104 = scmp.eq.s32.totalorder %s19, 1
      %p105 = por %p103, %p104
      %p107 = scmp.ne.s32.totalorder %s92, %s106
      %p108 = scmp.eq.s32.totalorder %s19, 0
      %p109 = por %p107, %p108
      %s110 = ssub.s32 %s13, %s20
      %p111 = scmp.eq.s32.totalorder %s110, 0
      %s113 = sadd.s32 %s112, 1
      %s114 = scalar_select %p111, %s112, %s113
      %p117 = pneg %p111
      %p118 = scmp.eq.s32.totalorder %s13, 1
      %p119 = por %p117, %p118
      %p120 = scmp.ne.s32.totalorder %s112, %s115
      %p121 = scmp.eq.s32.totalorder %s13, 0
      %p122 = por %p120, %p121
      %p123 = scmp.ne.s32.totalorder %s112, %s115
      %p124 = scmp.eq.s32.totalorder %s18, 1
      %p125 = por %p123, %p124
      %p126 = scmp.ne.s32.totalorder %s115, %s116
      %p127 = scmp.eq.s32.totalorder %s18, 0
      %p128 = por %p126, %p127
      %p129 = scmp.ne.s32.totalorder %s115, %s116
      %p130 = scmp.eq.s32.totalorder %s19, 1
      %p131 = por %p129, %p130
      %p133 = scmp.ne.s32.totalorder %s116, %s132
      %p134 = scmp.eq.s32.totalorder %s19, 0
      %p135 = por %p133, %p134
      %p136 = scmp.le.s32.totalorder 1, %s13
      %p137 = scmp.lt.s32.totalorder %s13, 3
      %p138 = pnand %p136, %p137
      %p139 = pneg %p138
      // Predicated region
      $region9: #{tpu_custom_call.1} parent=5 // pred_check
        _
      $region10: #{tpu_custom_call.1} parent=5 // pred_check_branch
        %141 = sbr.rel (%p138) target = $region12
      $region11: #{tpu_custom_call.1} parent=5 // pred_region
        %s142 = ssub.s32 %s13, 1
        // Predicated region
        $region13: #{tpu_custom_call.1} parent=11 // pred_check
          %p143 = pneg %p60
        $region14: #{tpu_custom_call.1} parent=11 // pred_check_branch
          %145 = sbr.rel (%p143) target = $region16
        $region15: #{tpu_custom_call.1} parent=11 // pred_region
          _
        $region16: #{tpu_custom_call.1} parent=11 // pred_fallthru
          _
        // Predicated region
        $region17: #{tpu_custom_call.1} parent=11 // pred_check
          %p146 = pneg %p81
        $region18: #{tpu_custom_call.1} parent=11 // pred_check_branch
          %148 = sbr.rel (%p146) target = $region20
        $region19: #{tpu_custom_call.1} parent=11 // pred_region
          _
        $region20: #{tpu_custom_call.1} parent=11 // pred_fallthru
          _
        // Predicated region
        $region21: #{tpu_custom_call.1} parent=11 // pred_check
          %p149 = pneg %p102
        $region22: #{tpu_custom_call.1} parent=11 // pred_check_branch
          %151 = sbr.rel (%p149) target = $region24
        $region23: #{tpu_custom_call.1} parent=11 // pred_region
          _
        $region24: #{tpu_custom_call.1} parent=11 // pred_fallthru
          _
      $region12: #{tpu_custom_call.1} parent=5 // pred_fallthru
        _
      %p152 = scmp.lt.s32.totalorder %s13, 2
      // Predicated region
      $region25: #{tpu_custom_call.1} parent=5 // pred_check
        %p153 = pneg %p152
      $region26: #{tpu_custom_call.1} parent=5 // pred_check_branch
        %155 = sbr.rel (%p153) target = $region28
      $region27: #{tpu_custom_call.1} parent=5 // pred_region
        // Predicated region
        $region29: #{tpu_custom_call.1} parent=27 // pred_check
          %p156 = pneg %p33
        $region30: #{tpu_custom_call.1} parent=27 // pred_check_branch
          %158 = sbr.rel (%p156) target = $region32
        $region31: #{tpu_custom_call.1} parent=27 // pred_region
          %p159 = scmp.lt.s32.totalorder %s13, 1
          %s160 = scalar_select %p159, %s13, 1
          %s161 = smul.addr %s160, 2
          %s162 = smul.addr %s161, 4
          %s163 = scalar_lea.vmem %s0, %s162
        $region32: #{tpu_custom_call.1} parent=27 // pred_fallthru
          _
      $region28: #{tpu_custom_call.1} parent=5 // pred_fallthru
        _
      %p164 = scmp.le.s32.totalorder 1, %s13
      %p165 = scmp.lt.s32.totalorder %s13, 3
      %p166 = pnand %p164, %p165
      %p167 = pneg %p166
      // Predicated region
      $region33: #{tpu_custom_call.1} parent=5 // pred_check
        _
      $region34: #{tpu_custom_call.1} parent=5 // pred_check_branch
        %169 = sbr.rel (%p166) target = $region36
      $region35: #{tpu_custom_call.1} parent=5 // pred_region
        %s170 = ssub.s32 %s13, 1
        %p171 = scmp.lt.s32.totalorder %s18, 1
        %s172 = scalar_select %p171, %s18, 1
        %s173 = smul.addr %s172, 2
        %s174 = smul.addr %s173, 4
        %s175 = scalar_lea.vmem %s0, %s174
        %p176 = pneg %p39
        %p177 = pneg %p36
        %p178 = pneg %p60
        %p179 = pneg %p57
        %p180 = pneg %p81
        %p181 = pneg %p78
        %p182 = pneg %p102
        %p183 = pneg %p99
        %p184 = pneg %p128
        %p185 = pneg %p125
        %s186 = sand.u32 %s115, 1
        %s187 = scalar_lea.sflag [#allocation4], %s186
        %s188 = sand.u32 %s115, 1
        %s189 = smul.addr %s188, 16
        %s190 = scalar_lea.vmem [#allocation3], %s189
        %p191 = scmp.lt.s32.totalorder %s18, 1
        %s192 = scalar_select %p191, %s18, 1
        %s193 = smul.addr %s192, 2
        %s194 = smul.addr %s193, 4
        %s195 = scalar_lea.vmem %s0, %s194
        %196 = vst [vmem:[#allocation2] sm:$0xf] 0.0
        %197 = vst [vmem:[#allocation2 + $0xc] sm:$0xf] 0.0
        %v198 = vld [vmem:[%s195] sm:$0xff]
        %199 = vst [vmem:[#allocation2 + $0x4] sm:$0xff] %v198
        %v200 = vld [vmem:[#allocation2] sm:$0xff]
        %v201 = vld [vmem:[#allocation2 + $0x8] sm:$0xf]
        %v202 = vld [vmem:[%s1] sm:$0xff]
        %s203 = scalar_lea.vmem %s1, 24
        %v204 = vld [vmem:[%s203] sm:$0xff]
        %v207 = vcombine.high %v200, %v200
        %208 = vrot.lane.b32.xlu0 %v200, 1
        %v209 = vpop.permute.xlu0 %208
        %210 = vrot.lane.b32.xlu0 %v207, 1
        %v211 = vpop.permute.xlu0 %210
        %212 = vrot.lane.b32.xlu0 %v201, 1
        %v213 = vpop.permute.xlu0 %212
        %vm214 = vcmask 7168
        %v215 = vsel %vm214, %v209, %v211
        %v216 = vsel %vm214, %v211, %v213
        %vm217 = vcmask 31744
        %v219 = vsel %vm217, %v204, 0
        %vm221 = vcmask 1043456
        %v222 = vsel %vm221, %v215, 0
        %v224 = vsel %vm221, %v216, 0
        %226 = vmatprep.subr.mxu0 %v224
        %227 = vmatpush1.msra.mxu0 %v222
        %228 = vmatprep.subr.mxu0 0.0
        %229 = vmatpush1.msra.mxu0 0.0
        %230 = vmatprep.subr.mxu0 0.0
        %231 = vmatpush1.msra.mxu0 0.0
        %232 = vmatprep.subr.mxu0 0.0
        %233 = vmatpush1.msra.mxu0 0.0
        %234 = vmatprep.subr.mxu0 0.0
        %235 = vmatpush1.msra.mxu0 0.0
        %236 = vmatprep.subr.mxu0 0.0
        %237 = vmatpush1.msra.mxu0 0.0
        %238 = vmatprep.subr.mxu0 0.0
        %239 = vmatpush1.msra.mxu0 0.0
        %240 = vmatprep.subr.mxu0 0.0
        %241 = vmatpush1.msra.mxu0 0.0
        %242 = vmatprep.subr.mxu0 0.0
        %243 = vmatpush1.msra.mxu0 0.0
        %244 = vmatprep.subr.mxu0 0.0
        %245 = vmatpush1.msra.mxu0 0.0
        %246 = vmatprep.subr.mxu0 0.0
        %247 = vmatpush1.msra.mxu0 0.0
        %248 = vmatprep.subr.mxu0 0.0
        %249 = vmatpush1.msra.mxu0 0.0
        %250 = vmatprep.subr.mxu0 0.0
        %251 = vmatpush1.msra.mxu0 0.0
        %252 = vmatprep.subr.mxu0 0.0
        %253 = vmatpush1.msra.mxu0 0.0
        %254 = vmatprep.subr.mxu0 0.0
        %255 = vmatpush1.msra.mxu0 0.0
        %256 = vmatprep.subr.mxu0 0.0
        %257 = vmatpush1.msra.mxu0 0.0
        %258 = vmatprep.subr.mxu0 0.0
        %259 = vmatpush1.msra.mxu0 0.0
        %260 = vmatprep.subr.mxu0 0.0
        %261 = vmatpush1.msra.mxu0 0.0
        %262 = vmatprep.subr.mxu0 0.0
        %263 = vmatpush1.msra.mxu0 0.0
        %264 = vmatprep.subr.mxu0 0.0
        %265 = vmatpush1.msra.mxu0 0.0
        %266 = vmatprep.subr.mxu0 0.0
        %267 = vmatpush1.msra.mxu0 0.0
        %268 = vmatprep.subr.mxu0 0.0
        %269 = vmatpush1.msra.mxu0 0.0
        %270 = vmatprep.subr.mxu0 0.0
        %271 = vmatpush1.msra.mxu0 0.0
        %272 = vmatprep.subr.mxu0 0.0
        %273 = vmatpush1.msra.mxu0 0.0
        %274 = vmatprep.subr.mxu0 0.0
        %275 = vmatpush1.msra.mxu0 0.0
        %276 = vmatprep.subr.mxu0 0.0
        %277 = vmatpush1.msra.mxu0 0.0
        %278 = vmatprep.subr.mxu0 0.0
        %279 = vmatpush1.msra.mxu0 0.0
        %280 = vmatprep.subr.mxu0 0.0
        %281 = vmatpush1.msra.mxu0 0.0
        %282 = vmatprep.subr.mxu0 0.0
        %283 = vmatpush1.msra.mxu0 0.0
        %284 = vmatprep.subr.mxu0 0.0
        %285 = vmatpush1.msra.mxu0 0.0
        %286 = vmatprep.subr.mxu0 0.0
        %287 = vmatpush1.msra.mxu0 0.0
        %288 = vmatprep.subr.mxu0 0.0
        %289 = vmatpush1.msra.mxu0 0.0
        %290 = vmatprep.mubr.f32.mxu0 0.0
        %291 = vmatmul.mubr.f32.gmra.mrb[0].mxu0 %v219
        %v292 = vpop.f32.mrb[0].mxu0
        %v293 = vadd.f32 0.0, %v292
        %v294 = vpop.f32.mrb[0].mxu0
        %v295 = vadd.f32 0.0, %v294
        %296 = vdwg.mxu0
        %297 = vrot.lane.b32.xlu0 %v200, 17
        %v298 = vpop.permute.xlu0 %297
        %299 = vrot.lane.b32.xlu0 %v207, 17
        %v300 = vpop.permute.xlu0 %299
        %301 = vrot.lane.b32.xlu0 %v201, 17
        %v302 = vpop.permute.xlu0 %301
        %vm303 = vcmask 138240
        %v304 = vsel %vm303, %v298, %v300
        %v305 = vsel %vm303, %v300, %v302
        %v307 = vsel %vm217, %v202, 0
        %v309 = vsel %vm221, %v304, 0
        %v311 = vsel %vm221, %v305, 0
        %313 = vmatprep.subr.mxu0 %v311
        %314 = vmatpush1.msra.mxu0 %v309
        %315 = vmatprep.subr.mxu0 0.0
        %316 = vmatpush1.msra.mxu0 0.0
        %317 = vmatprep.subr.mxu0 0.0
        %318 = vmatpush1.msra.mxu0 0.0
        %319 = vmatprep.subr.mxu0 0.0
        %320 = vmatpush1.msra.mxu0 0.0
        %321 = vmatprep.subr.mxu0 0.0
        %322 = vmatpush1.msra.mxu0 0.0
        %323 = vmatprep.subr.mxu0 0.0
        %324 = vmatpush1.msra.mxu0 0.0
        %325 = vmatprep.subr.mxu0 0.0
        %326 = vmatpush1.msra.mxu0 0.0
        %327 = vmatprep.subr.mxu0 0.0
        %328 = vmatpush1.msra.mxu0 0.0
        %329 = vmatprep.subr.mxu0 0.0
        %330 = vmatpush1.msra.mxu0 0.0
        %331 = vmatprep.subr.mxu0 0.0
        %332 = vmatpush1.msra.mxu0 0.0
        %333 = vmatprep.subr.mxu0 0.0
        %334 = vmatpush1.msra.mxu0 0.0
        %335 = vmatprep.subr.mxu0 0.0
        %336 = vmatpush1.msra.mxu0 0.0
        %337 = vmatprep.subr.mxu0 0.0
        %338 = vmatpush1.msra.mxu0 0.0
        %339 = vmatprep.subr.mxu0 0.0
        %340 = vmatpush1.msra.mxu0 0.0
        %341 = vmatprep.subr.mxu0 0.0
        %342 = vmatpush1.msra.mxu0 0.0
        %343 = vmatprep.subr.mxu0 0.0
        %344 = vmatpush1.msra.mxu0 0.0
        %345 = vmatprep.subr.mxu0 0.0
        %346 = vmatpush1.msra.mxu0 0.0
        %347 = vmatprep.subr.mxu0 0.0
        %348 = vmatpush1.msra.mxu0 0.0
        %349 = vmatprep.subr.mxu0 0.0
        %350 = vmatpush1.msra.mxu0 0.0
        %351 = vmatprep.subr.mxu0 0.0
        %352 = vmatpush1.msra.mxu0 0.0
        %353 = vmatprep.subr.mxu0 0.0
        %354 = vmatpush1.msra.mxu0 0.0
        %355 = vmatprep.subr.mxu0 0.0
        %356 = vmatpush1.msra.mxu0 0.0
        %357 = vmatprep.subr.mxu0 0.0
        %358 = vmatpush1.msra.mxu0 0.0
        %359 = vmatprep.subr.mxu0 0.0
        %360 = vmatpush1.msra.mxu0 0.0
        %361 = vmatprep.subr.mxu0 0.0
        %362 = vmatpush1.msra.mxu0 0.0
        %363 = vmatprep.subr.mxu0 0.0
        %364 = vmatpush1.msra.mxu0 0.0
        %365 = vmatprep.subr.mxu0 0.0
        %366 = vmatpush1.msra.mxu0 0.0
        %367 = vmatprep.subr.mxu0 0.0
        %368 = vmatpush1.msra.mxu0 0.0
        %369 = vmatprep.subr.mxu0 0.0
        %370 = vmatpush1.msra.mxu0 0.0
        %371 = vmatprep.subr.mxu0 0.0
        %372 = vmatpush1.msra.mxu0 0.0
        %373 = vmatprep.subr.mxu0 0.0
        %374 = vmatpush1.msra.mxu0 0.0
        %375 = vmatprep.subr.mxu0 0.0
        %376 = vmatpush1.msra.mxu0 0.0
        %377 = vmatprep.mubr.f32.mxu0 0.0
        %378 = vmatmul.mubr.f32.gmra.mrb[0].mxu0 %v307
        %v379 = vpop.f32.mrb[0].mxu0
        %v380 = vadd.f32 %v293, %v379
        %v381 = vpop.f32.mrb[0].mxu0
        %v382 = vadd.f32 %v295, %v381
        %383 = vdwg.mxu0
        %v384 = vld [vmem:[#allocation2 + $0x4] sm:$0xff]
        %v385 = vld [vmem:[#allocation2 + $0xc] sm:$0xf]
        %s386 = scalar_lea.vmem %s1, 48
        %v387 = vld [vmem:[%s386] sm:$0xff]
        %v390 = vcombine.high %v384, %v384
        %391 = vrot.lane.b32.xlu0 %v384, 113
        %v392 = vpop.permute.xlu0 %391
        %393 = vrot.lane.b32.xlu0 %v390, 113
        %v394 = vpop.permute.xlu0 %393
        %395 = vrot.lane.b32.xlu0 %v385, 113
        %v396 = vpop.permute.xlu0 %395
        %vm397 = vcmask 924672
        %v398 = vsel %vm397, %v392, %v394
        %v399 = vsel %vm397, %v394, %v396
        %v401 = vsel %vm217, %v387, 0
        %v403 = vsel %vm221, %v398, 0
        %v405 = vsel %vm221, %v399, 0
        %407 = vmatprep.subr.mxu0 %v405
        %408 = vmatpush1.msra.mxu0 %v403
        %409 = vmatprep.subr.mxu0 0.0
        %410 = vmatpush1.msra.mxu0 0.0
        %411 = vmatprep.subr.mxu0 0.0
        %412 = vmatpush1.msra.mxu0 0.0
        %413 = vmatprep.subr.mxu0 0.0
        %414 = vmatpush1.msra.mxu0 0.0
        %415 = vmatprep.subr.mxu0 0.0
        %416 = vmatpush1.msra.mxu0 0.0
        %417 = vmatprep.subr.mxu0 0.0
        %418 = vmatpush1.msra.mxu0 0.0
        %419 = vmatprep.subr.mxu0 0.0
        %420 = vmatpush1.msra.mxu0 0.0
        %421 = vmatprep.subr.mxu0 0.0
        %422 = vmatpush1.msra.mxu0 0.0
        %423 = vmatprep.subr.mxu0 0.0
        %424 = vmatpush1.msra.mxu0 0.0
        %425 = vmatprep.subr.mxu0 0.0
        %426 = vmatpush1.msra.mxu0 0.0
        %427 = vmatprep.subr.mxu0 0.0
        %428 = vmatpush1.msra.mxu0 0.0
        %429 = vmatprep.subr.mxu0 0.0
        %430 = vmatpush1.msra.mxu0 0.0
        %431 = vmatprep.subr.mxu0 0.0
        %432 = vmatpush1.msra.mxu0 0.0
        %433 = vmatprep.subr.mxu0 0.0
        %434 = vmatpush1.msra.mxu0 0.0
        %435 = vmatprep.subr.mxu0 0.0
        %436 = vmatpush1.msra.mxu0 0.0
        %437 = vmatprep.subr.mxu0 0.0
        %438 = vmatpush1.msra.mxu0 0.0
        %439 = vmatprep.subr.mxu0 0.0
        %440 = vmatpush1.msra.mxu0 0.0
        %441 = vmatprep.subr.mxu0 0.0
        %442 = vmatpush1.msra.mxu0 0.0
        %443 = vmatprep.subr.mxu0 0.0
        %444 = vmatpush1.msra.mxu0 0.0
        %445 = vmatprep.subr.mxu0 0.0
        %446 = vmatpush1.msra.mxu0 0.0
        %447 = vmatprep.subr.mxu0 0.0
        %448 = vmatpush1.msra.mxu0 0.0
        %449 = vmatprep.subr.mxu0 0.0
        %450 = vmatpush1.msra.mxu0 0.0
        %451 = vmatprep.subr.mxu0 0.0
        %452 = vmatpush1.msra.mxu0 0.0
        %453 = vmatprep.subr.mxu0 0.0
        %454 = vmatpush1.msra.mxu0 0.0
        %455 = vmatprep.subr.mxu0 0.0
        %456 = vmatpush1.msra.mxu0 0.0
        %457 = vmatprep.subr.mxu0 0.0
        %458 = vmatpush1.msra.mxu0 0.0
        %459 = vmatprep.subr.mxu0 0.0
        %460 = vmatpush1.msra.mxu0 0.0
        %461 = vmatprep.subr.mxu0 0.0
        %462 = vmatpush1.msra.mxu0 0.0
        %463 = vmatprep.subr.mxu0 0.0
        %464 = vmatpush1.msra.mxu0 0.0
        %465 = vmatprep.subr.mxu0 0.0
        %466 = vmatpush1.msra.mxu0 0.0
        %467 = vmatprep.subr.mxu0 0.0
        %468 = vmatpush1.msra.mxu0 0.0
        %469 = vmatprep.subr.mxu0 0.0
        %470 = vmatpush1.msra.mxu0 0.0
        %471 = vmatprep.mubr.f32.mxu0 0.0
        %472 = vmatmul.mubr.f32.gmra.mrb[0].mxu0 %v401
        %v473 = vpop.f32.mrb[0].mxu0
        %v474 = vadd.f32 0.0, %v473
        %v475 = vpop.f32.mrb[0].mxu0
        %v476 = vadd.f32 0.0, %v475
        %477 = vdwg.mxu0
        %v478 = vadd.f32 %v380, %v474
        %v479 = vadd.f32 %v382, %v476
        %v480 = vld [vmem:[#allocation2] sm:$0xff]
        %v481 = vld [vmem:[#allocation2 + $0x8] sm:$0xf]
        %s482 = scalar_lea.vmem %s1, 8
        %v483 = vld [vmem:[%s482] sm:$0xff]
        %v484 = vld [vmem:[#allocation2 + $0x4] sm:$0xff]
        %s485 = scalar_lea.vmem %s1, 32
        %v486 = vld [vmem:[%s485] sm:$0xff]
        %v488 = vcombine.high %v484, %v484
        %v490 = vsel %vm217, %v486, 0
        %v492 = vsel %vm221, %v484, 0
        %v494 = vsel %vm221, %v488, 0
        %496 = vmatprep.subr.mxu0 %v494
        %497 = vmatpush1.msra.mxu0 %v492
        %498 = vmatprep.subr.mxu0 0.0
        %499 = vmatpush1.msra.mxu0 0.0
        %500 = vmatprep.subr.mxu0 0.0
        %501 = vmatpush1.msra.mxu0 0.0
        %502 = vmatprep.subr.mxu0 0.0
        %503 = vmatpush1.msra.mxu0 0.0
        %504 = vmatprep.subr.mxu0 0.0
        %505 = vmatpush1.msra.mxu0 0.0
        %506 = vmatprep.subr.mxu0 0.0
        %507 = vmatpush1.msra.mxu0 0.0
        %508 = vmatprep.subr.mxu0 0.0
        %509 = vmatpush1.msra.mxu0 0.0
        %510 = vmatprep.subr.mxu0 0.0
        %511 = vmatpush1.msra.mxu0 0.0
        %512 = vmatprep.subr.mxu0 0.0
        %513 = vmatpush1.msra.mxu0 0.0
        %514 = vmatprep.subr.mxu0 0.0
        %515 = vmatpush1.msra.mxu0 0.0
        %516 = vmatprep.subr.mxu0 0.0
        %517 = vmatpush1.msra.mxu0 0.0
        %518 = vmatprep.subr.mxu0 0.0
        %519 = vmatpush1.msra.mxu0 0.0
        %520 = vmatprep.subr.mxu0 0.0
        %521 = vmatpush1.msra.mxu0 0.0
        %522 = vmatprep.subr.mxu0 0.0
        %523 = vmatpush1.msra.mxu0 0.0
        %524 = vmatprep.subr.mxu0 0.0
        %525 = vmatpush1.msra.mxu0 0.0
        %526 = vmatprep.subr.mxu0 0.0
        %527 = vmatpush1.msra.mxu0 0.0
        %528 = vmatprep.subr.mxu0 0.0
        %529 = vmatpush1.msra.mxu0 0.0
        %530 = vmatprep.subr.mxu0 0.0
        %531 = vmatpush1.msra.mxu0 0.0
        %532 = vmatprep.subr.mxu0 0.0
        %533 = vmatpush1.msra.mxu0 0.0
        %534 = vmatprep.subr.mxu0 0.0
        %535 = vmatpush1.msra.mxu0 0.0
        %536 = vmatprep.subr.mxu0 0.0
        %537 = vmatpush1.msra.mxu0 0.0
        %538 = vmatprep.subr.mxu0 0.0
        %539 = vmatpush1.msra.mxu0 0.0
        %540 = vmatprep.subr.mxu0 0.0
        %541 = vmatpush1.msra.mxu0 0.0
        %542 = vmatprep.subr.mxu0 0.0
        %543 = vmatpush1.msra.mxu0 0.0
        %544 = vmatprep.subr.mxu0 0.0
        %545 = vmatpush1.msra.mxu0 0.0
        %546 = vmatprep.subr.mxu0 0.0
        %547 = vmatpush1.msra.mxu0 0.0
        %548 = vmatprep.subr.mxu0 0.0
        %549 = vmatpush1.msra.mxu0 0.0
        %550 = vmatprep.subr.mxu0 0.0
        %551 = vmatpush1.msra.mxu0 0.0
        %552 = vmatprep.subr.mxu0 0.0
        %553 = vmatpush1.msra.mxu0 0.0
        %554 = vmatprep.subr.mxu0 0.0
        %555 = vmatpush1.msra.mxu0 0.0
        %556 = vmatprep.subr.mxu0 0.0
        %557 = vmatpush1.msra.mxu0 0.0
        %558 = vmatprep.subr.mxu0 0.0
        %559 = vmatpush1.msra.mxu0 0.0
        %560 = vmatprep.mubr.f32.mxu0 0.0
        %561 = vmatmul.mubr.f32.gmra.mrb[0].mxu0 %v490
        %v562 = vpop.f32.mrb[0].mxu0
        %v563 = vadd.f32 0.0, %v562
        %v564 = vpop.f32.mrb[0].mxu0
        %v565 = vadd.f32 0.0, %v564
        %566 = vdwg.mxu0
        %v569 = vcombine.high %v480, %v480
        %570 = vrot.lane.b32.xlu0 %v480, 16
        %v571 = vpop.permute.xlu0 %570
        %572 = vrot.lane.b32.xlu0 %v569, 16
        %v573 = vpop.permute.xlu0 %572
        %574 = vrot.lane.b32.xlu0 %v481, 16
        %v575 = vpop.permute.xlu0 %574
        %vm576 = vcmask 130048
        %v577 = vsel %vm576, %v571, %v573
        %v578 = vsel %vm576, %v573, %v575
        %v580 = vsel %vm217, %v483, 0
        %v582 = vsel %vm221, %v577, 0
        %v584 = vsel %vm221, %v578, 0
        %586 = vmatprep.subr.mxu0 %v584
        %587 = vmatpush1.msra.mxu0 %v582
        %588 = vmatprep.subr.mxu0 0.0
        %589 = vmatpush1.msra.mxu0 0.0
        %590 = vmatprep.subr.mxu0 0.0
        %591 = vmatpush1.msra.mxu0 0.0
        %592 = vmatprep.subr.mxu0 0.0
        %593 = vmatpush1.msra.mxu0 0.0
        %594 = vmatprep.subr.mxu0 0.0
        %595 = vmatpush1.msra.mxu0 0.0
        %596 = vmatprep.subr.mxu0 0.0
        %597 = vmatpush1.msra.mxu0 0.0
        %598 = vmatprep.subr.mxu0 0.0
        %599 = vmatpush1.msra.mxu0 0.0
        %600 = vmatprep.subr.mxu0 0.0
        %601 = vmatpush1.msra.mxu0 0.0
        %602 = vmatprep.subr.mxu0 0.0
        %603 = vmatpush1.msra.mxu0 0.0
        %604 = vmatprep.subr.mxu0 0.0
        %605 = vmatpush1.msra.mxu0 0.0
        %606 = vmatprep.subr.mxu0 0.0
        %607 = vmatpush1.msra.mxu0 0.0
        %608 = vmatprep.subr.mxu0 0.0
        %609 = vmatpush1.msra.mxu0 0.0
        %610 = vmatprep.subr.mxu0 0.0
        %611 = vmatpush1.msra.mxu0 0.0
        %612 = vmatprep.subr.mxu0 0.0
        %613 = vmatpush1.msra.mxu0 0.0
        %614 = vmatprep.subr.mxu0 0.0
        %615 = vmatpush1.msra.mxu0 0.0
        %616 = vmatprep.subr.mxu0 0.0
        %617 = vmatpush1.msra.mxu0 0.0
        %618 = vmatprep.subr.mxu0 0.0
        %619 = vmatpush1.msra.mxu0 0.0
        %620 = vmatprep.subr.mxu0 0.0
        %621 = vmatpush1.msra.mxu0 0.0
        %622 = vmatprep.subr.mxu0 0.0
        %623 = vmatpush1.msra.mxu0 0.0
        %624 = vmatprep.subr.mxu0 0.0
        %625 = vmatpush1.msra.mxu0 0.0
        %626 = vmatprep.subr.mxu0 0.0
        %627 = vmatpush1.msra.mxu0 0.0
        %628 = vmatprep.subr.mxu0 0.0
        %629 = vmatpush1.msra.mxu0 0.0
        %630 = vmatprep.subr.mxu0 0.0
        %631 = vmatpush1.msra.mxu0 0.0
        %632 = vmatprep.subr.mxu0 0.0
        %633 = vmatpush1.msra.mxu0 0.0
        %634 = vmatprep.subr.mxu0 0.0
        %635 = vmatpush1.msra.mxu0 0.0
        %636 = vmatprep.subr.mxu0 0.0
        %637 = vmatpush1.msra.mxu0 0.0
        %638 = vmatprep.subr.mxu0 0.0
        %639 = vmatpush1.msra.mxu0 0.0
        %640 = vmatprep.subr.mxu0 0.0
        %641 = vmatpush1.msra.mxu0 0.0
        %642 = vmatprep.subr.mxu0 0.0
        %643 = vmatpush1.msra.mxu0 0.0
        %644 = vmatprep.subr.mxu0 0.0
        %645 = vmatpush1.msra.mxu0 0.0
        %646 = vmatprep.subr.mxu0 0.0
        %647 = vmatpush1.msra.mxu0 0.0
        %648 = vmatprep.subr.mxu0 0.0
        %649 = vmatpush1.msra.mxu0 0.0
        %650 = vmatprep.mubr.f32.mxu0 0.0
        %651 = vmatmul.mubr.f32.gmra.mrb[0].mxu0 %v580
        %v652 = vpop.f32.mrb[0].mxu0
        %v653 = vadd.f32 %v563, %v652
        %v654 = vpop.f32.mrb[0].mxu0
        %v655 = vadd.f32 %v565, %v654
        %656 = vdwg.mxu0
        %v657 = vld [vmem:[#allocation2 + $0x4] sm:$0xff]
        %v658 = vld [vmem:[#allocation2 + $0xc] sm:$0xf]
        %s659 = scalar_lea.vmem %s1, 56
        %v660 = vld [vmem:[%s659] sm:$0xff]
        %v663 = vcombine.high %v657, %v657
        %664 = vrot.lane.b32.xlu0 %v657, 112
        %v665 = vpop.permute.xlu0 %664
        %666 = vrot.lane.b32.xlu0 %v663, 112
        %v667 = vpop.permute.xlu0 %666
        %668 = vrot.lane.b32.xlu0 %v658, 112
        %v669 = vpop.permute.xlu0 %668
        %vm670 = vcmask 916480
        %v671 = vsel %vm670, %v665, %v667
        %v672 = vsel %vm670, %v667, %v669
        %v674 = vsel %vm217, %v660, 0
        %v676 = vsel %vm221, %v671, 0
        %v678 = vsel %vm221, %v672, 0
        %680 = vmatprep.subr.mxu0 %v678
        %681 = vmatpush1.msra.mxu0 %v676
        %682 = vmatprep.subr.mxu0 0.0
        %683 = vmatpush1.msra.mxu0 0.0
        %684 = vmatprep.subr.mxu0 0.0
        %685 = vmatpush1.msra.mxu0 0.0
        %686 = vmatprep.subr.mxu0 0.0
        %687 = vmatpush1.msra.mxu0 0.0
        %688 = vmatprep.subr.mxu0 0.0
        %689 = vmatpush1.msra.mxu0 0.0
        %690 = vmatprep.subr.mxu0 0.0
        %691 = vmatpush1.msra.mxu0 0.0
        %692 = vmatprep.subr.mxu0 0.0
        %693 = vmatpush1.msra.mxu0 0.0
        %694 = vmatprep.subr.mxu0 0.0
        %695 = vmatpush1.msra.mxu0 0.0
        %696 = vmatprep.subr.mxu0 0.0
        %697 = vmatpush1.msra.mxu0 0.0
        %698 = vmatprep.subr.mxu0 0.0
        %699 = vmatpush1.msra.mxu0 0.0
        %700 = vmatprep.subr.mxu0 0.0
        %701 = vmatpush1.msra.mxu0 0.0
        %702 = vmatprep.subr.mxu0 0.0
        %703 = vmatpush1.msra.mxu0 0.0
        %704 = vmatprep.subr.mxu0 0.0
        %705 = vmatpush1.msra.mxu0 0.0
        %706 = vmatprep.subr.mxu0 0.0
        %707 = vmatpush1.msra.mxu0 0.0
        %708 = vmatprep.subr.mxu0 0.0
        %709 = vmatpush1.msra.mxu0 0.0
        %710 = vmatprep.subr.mxu0 0.0
        %711 = vmatpush1.msra.mxu0 0.0
        %712 = vmatprep.subr.mxu0 0.0
        %713 = vmatpush1.msra.mxu0 0.0
        %714 = vmatprep.subr.mxu0 0.0
        %715 = vmatpush1.msra.mxu0 0.0
        %716 = vmatprep.subr.mxu0 0.0
        %717 = vmatpush1.msra.mxu0 0.0
        %718 = vmatprep.subr.mxu0 0.0
        %719 = vmatpush1.msra.mxu0 0.0
        %720 = vmatprep.subr.mxu0 0.0
        %721 = vmatpush1.msra.mxu0 0.0
        %722 = vmatprep.subr.mxu0 0.0
        %723 = vmatpush1.msra.mxu0 0.0
        %724 = vmatprep.subr.mxu0 0.0
        %725 = vmatpush1.msra.mxu0 0.0
        %726 = vmatprep.subr.mxu0 0.0
        %727 = vmatpush1.msra.mxu0 0.0
        %728 = vmatprep.subr.mxu0 0.0
        %729 = vmatpush1.msra.mxu0 0.0
        %730 = vmatprep.subr.mxu0 0.0
        %731 = vmatpush1.msra.mxu0 0.0
        %732 = vmatprep.subr.mxu0 0.0
        %733 = vmatpush1.msra.mxu0 0.0
        %734 = vmatprep.subr.mxu0 0.0
        %735 = vmatpush1.msra.mxu0 0.0
        %736 = vmatprep.subr.mxu0 0.0
        %737 = vmatpush1.msra.mxu0 0.0
        %738 = vmatprep.subr.mxu0 0.0
        %739 = vmatpush1.msra.mxu0 0.0
        %740 = vmatprep.subr.mxu0 0.0
        %741 = vmatpush1.msra.mxu0 0.0
        %742 = vmatprep.subr.mxu0 0.0
        %743 = vmatpush1.msra.mxu0 0.0
        %744 = vmatprep.mubr.f32.mxu0 0.0
        %745 = vmatmul.mubr.f32.gmra.mrb[0].mxu0 %v674
        %v746 = vpop.f32.mrb[0].mxu0
        %v747 = vadd.f32 0.0, %v746
        %v748 = vpop.f32.mrb[0].mxu0
        %v749 = vadd.f32 0.0, %v748
        %750 = vdwg.mxu0
        %v751 = vadd.f32 %v653, %v747
        %v752 = vadd.f32 %v655, %v749
        %v753 = vld [vmem:[#allocation2] sm:$0xff]
        %v754 = vld [vmem:[#allocation2 + $0x8] sm:$0xf]
        %s755 = scalar_lea.vmem %s1, 16
        %v756 = vld [vmem:[%s755] sm:$0xff]
        %v757 = vld [vmem:[#allocation2 + $0x4] sm:$0xff]
        %v758 = vld [vmem:[#allocation2 + $0xc] sm:$0xf]
        %s759 = scalar_lea.vmem %s1, 40
        %v760 = vld [vmem:[%s759] sm:$0xff]
        %v763 = vcombine.high %v757, %v757
        %764 = vrot.lane.b32.xlu0 %v757, 127
        %v765 = vpop.permute.xlu0 %764
        %766 = vrot.lane.b32.xlu0 %v763, 127
        %v767 = vpop.permute.xlu0 %766
        %768 = vrot.lane.b32.xlu0 %v758, 127
        %v769 = vpop.permute.xlu0 %768
        %vm770 = vcmask 1039360
        %v771 = vsel %vm770, %v765, %v767
        %v772 = vsel %vm770, %v767, %v769
        %v774 = vsel %vm217, %v760, 0
        %v776 = vsel %vm221, %v771, 0
        %v778 = vsel %vm221, %v772, 0
        %780 = vmatprep.subr.mxu0 %v778
        %781 = vmatpush1.msra.mxu0 %v776
        %782 = vmatprep.subr.mxu0 0.0
        %783 = vmatpush1.msra.mxu0 0.0
        %784 = vmatprep.subr.mxu0 0.0
        %785 = vmatpush1.msra.mxu0 0.0
        %786 = vmatprep.subr.mxu0 0.0
        %787 = vmatpush1.msra.mxu0 0.0
        %788 = vmatprep.subr.mxu0 0.0
        %789 = vmatpush1.msra.mxu0 0.0
        %790 = vmatprep.subr.mxu0 0.0
        %791 = vmatpush1.msra.mxu0 0.0
        %792 = vmatprep.subr.mxu0 0.0
        %793 = vmatpush1.msra.mxu0 0.0
        %794 = vmatprep.subr.mxu0 0.0
        %795 = vmatpush1.msra.mxu0 0.0
        %796 = vmatprep.subr.mxu0 0.0
        %797 = vmatpush1.msra.mxu0 0.0
        %798 = vmatprep.subr.mxu0 0.0
        %799 = vmatpush1.msra.mxu0 0.0
        %800 = vmatprep.subr.mxu0 0.0
        %801 = vmatpush1.msra.mxu0 0.0
        %802 = vmatprep.subr.mxu0 0.0
        %803 = vmatpush1.msra.mxu0 0.0
        %804 = vmatprep.subr.mxu0 0.0
        %805 = vmatpush1.msra.mxu0 0.0
        %806 = vmatprep.subr.mxu0 0.0
        %807 = vmatpush1.msra.mxu0 0.0
        %808 = vmatprep.subr.mxu0 0.0
        %809 = vmatpush1.msra.mxu0 0.0
        %810 = vmatprep.subr.mxu0 0.0
        %811 = vmatpush1.msra.mxu0 0.0
        %812 = vmatprep.subr.mxu0 0.0
        %813 = vmatpush1.msra.mxu0 0.0
        %814 = vmatprep.subr.mxu0 0.0
        %815 = vmatpush1.msra.mxu0 0.0
        %816 = vmatprep.subr.mxu0 0.0
        %817 = vmatpush1.msra.mxu0 0.0
        %818 = vmatprep.subr.mxu0 0.0
        %819 = vmatpush1.msra.mxu0 0.0
        %820 = vmatprep.subr.mxu0 0.0
        %821 = vmatpush1.msra.mxu0 0.0
        %822 = vmatprep.subr.mxu0 0.0
        %823 = vmatpush1.msra.mxu0 0.0
        %824 = vmatprep.subr.mxu0 0.0
        %825 = vmatpush1.msra.mxu0 0.0
        %826 = vmatprep.subr.mxu0 0.0
        %827 = vmatpush1.msra.mxu0 0.0
        %828 = vmatprep.subr.mxu0 0.0
        %829 = vmatpush1.msra.mxu0 0.0
        %830 = vmatprep.subr.mxu0 0.0
        %831 = vmatpush1.msra.mxu0 0.0
        %832 = vmatprep.subr.mxu0 0.0
        %833 = vmatpush1.msra.mxu0 0.0
        %834 = vmatprep.subr.mxu0 0.0
        %835 = vmatpush1.msra.mxu0 0.0
        %836 = vmatprep.subr.mxu0 0.0
        %837 = vmatpush1.msra.mxu0 0.0
        %838 = vmatprep.subr.mxu0 0.0
        %839 = vmatpush1.msra.mxu0 0.0
        %840 = vmatprep.subr.mxu0 0.0
        %841 = vmatpush1.msra.mxu0 0.0
        %842 = vmatprep.subr.mxu0 0.0
        %843 = vmatpush1.msra.mxu0 0.0
        %844 = vmatprep.mubr.f32.mxu0 0.0
        %845 = vmatmul.mubr.f32.gmra.mrb[0].mxu0 %v774
        %v846 = vpop.f32.mrb[0].mxu0
        %v847 = vadd.f32 0.0, %v846
        %v848 = vpop.f32.mrb[0].mxu0
        %v849 = vadd.f32 0.0, %v848
        %850 = vdwg.mxu0
        %v853 = vcombine.high %v753, %v753
        %854 = vrot.lane.b32.xlu0 %v753, 15
        %v855 = vpop.permute.xlu0 %854
        %856 = vrot.lane.b32.xlu0 %v853, 15
        %v857 = vpop.permute.xlu0 %856
        %858 = vrot.lane.b32.xlu0 %v754, 15
        %v859 = vpop.permute.xlu0 %858
        %vm860 = vcmask 121856
        %v861 = vsel %vm860, %v855, %v857
        %v862 = vsel %vm860, %v857, %v859
        %v864 = vsel %vm217, %v756, 0
        %v866 = vsel %vm221, %v861, 0
        %v868 = vsel %vm221, %v862, 0
        %870 = vmatprep.subr.mxu0 %v868
        %871 = vmatpush1.msra.mxu0 %v866
        %872 = vmatprep.subr.mxu0 0.0
        %873 = vmatpush1.msra.mxu0 0.0
        %874 = vmatprep.subr.mxu0 0.0
        %875 = vmatpush1.msra.mxu0 0.0
        %876 = vmatprep.subr.mxu0 0.0
        %877 = vmatpush1.msra.mxu0 0.0
        %878 = vmatprep.subr.mxu0 0.0
        %879 = vmatpush1.msra.mxu0 0.0
        %880 = vmatprep.subr.mxu0 0.0
        %881 = vmatpush1.msra.mxu0 0.0
        %882 = vmatprep.subr.mxu0 0.0
        %883 = vmatpush1.msra.mxu0 0.0
        %884 = vmatprep.subr.mxu0 0.0
        %885 = vmatpush1.msra.mxu0 0.0
        %886 = vmatprep.subr.mxu0 0.0
        %887 = vmatpush1.msra.mxu0 0.0
        %888 = vmatprep.subr.mxu0 0.0
        %889 = vmatpush1.msra.mxu0 0.0
        %890 = vmatprep.subr.mxu0 0.0
        %891 = vmatpush1.msra.mxu0 0.0
        %892 = vmatprep.subr.mxu0 0.0
        %893 = vmatpush1.msra.mxu0 0.0
        %894 = vmatprep.subr.mxu0 0.0
        %895 = vmatpush1.msra.mxu0 0.0
        %896 = vmatprep.subr.mxu0 0.0
        %897 = vmatpush1.msra.mxu0 0.0
        %898 = vmatprep.subr.mxu0 0.0
        %899 = vmatpush1.msra.mxu0 0.0
        %900 = vmatprep.subr.mxu0 0.0
        %901 = vmatpush1.msra.mxu0 0.0
        %902 = vmatprep.subr.mxu0 0.0
        %903 = vmatpush1.msra.mxu0 0.0
        %904 = vmatprep.subr.mxu0 0.0
        %905 = vmatpush1.msra.mxu0 0.0
        %906 = vmatprep.subr.mxu0 0.0
        %907 = vmatpush1.msra.mxu0 0.0
        %908 = vmatprep.subr.mxu0 0.0
        %909 = vmatpush1.msra.mxu0 0.0
        %910 = vmatprep.subr.mxu0 0.0
        %911 = vmatpush1.msra.mxu0 0.0
        %912 = vmatprep.subr.mxu0 0.0
        %913 = vmatpush1.msra.mxu0 0.0
        %914 = vmatprep.subr.mxu0 0.0
        %915 = vmatpush1.msra.mxu0 0.0
        %916 = vmatprep.subr.mxu0 0.0
        %917 = vmatpush1.msra.mxu0 0.0
        %918 = vmatprep.subr.mxu0 0.0
        %919 = vmatpush1.msra.mxu0 0.0
        %920 = vmatprep.subr.mxu0 0.0
        %921 = vmatpush1.msra.mxu0 0.0
        %922 = vmatprep.subr.mxu0 0.0
        %923 = vmatpush1.msra.mxu0 0.0
        %924 = vmatprep.subr.mxu0 0.0
        %925 = vmatpush1.msra.mxu0 0.0
        %926 = vmatprep.subr.mxu0 0.0
        %927 = vmatpush1.msra.mxu0 0.0
        %928 = vmatprep.subr.mxu0 0.0
        %929 = vmatpush1.msra.mxu0 0.0
        %930 = vmatprep.subr.mxu0 0.0
        %931 = vmatpush1.msra.mxu0 0.0
        %932 = vmatprep.subr.mxu0 0.0
        %933 = vmatpush1.msra.mxu0 0.0
        %934 = vmatprep.mubr.f32.mxu0 0.0
        %935 = vmatmul.mubr.f32.gmra.mrb[0].mxu0 %v864
        %v936 = vpop.f32.mrb[0].mxu0
        %v937 = vadd.f32 %v847, %v936
        %v938 = vpop.f32.mrb[0].mxu0
        %v939 = vadd.f32 %v849, %v938
        %940 = vdwg.mxu0
        %v941 = vld [vmem:[#allocation2 + $0x4] sm:$0xff]
        %v942 = vld [vmem:[#allocation2 + $0xc] sm:$0xf]
        %s943 = scalar_lea.vmem %s1, 64
        %v944 = vld [vmem:[%s943] sm:$0xff]
        %v947 = vcombine.high %v941, %v941
        %948 = vrot.lane.b32.xlu0 %v941, 111
        %v949 = vpop.permute.xlu0 %948
        %950 = vrot.lane.b32.xlu0 %v947, 111
        %v951 = vpop.permute.xlu0 %950
        %952 = vrot.lane.b32.xlu0 %v942, 111
        %v953 = vpop.permute.xlu0 %952
        %vm954 = vcmask 908288
        %v955 = vsel %vm954, %v949, %v951
        %v956 = vsel %vm954, %v951, %v953
        %v958 = vsel %vm217, %v944, 0
        %v960 = vsel %vm221, %v955, 0
        %v962 = vsel %vm221, %v956, 0
        %964 = vmatprep.subr.mxu0 %v962
        %965 = vmatpush1.msra.mxu0 %v960
        %966 = vmatprep.subr.mxu0 0.0
        %967 = vmatpush1.msra.mxu0 0.0
        %968 = vmatprep.subr.mxu0 0.0
        %969 = vmatpush1.msra.mxu0 0.0
        %970 = vmatprep.subr.mxu0 0.0
        %971 = vmatpush1.msra.mxu0 0.0
        %972 = vmatprep.subr.mxu0 0.0
        %973 = vmatpush1.msra.mxu0 0.0
        %974 = vmatprep.subr.mxu0 0.0
        %975 = vmatpush1.msra.mxu0 0.0
        %976 = vmatprep.subr.mxu0 0.0
        %977 = vmatpush1.msra.mxu0 0.0
        %978 = vmatprep.subr.mxu0 0.0
        %979 = vmatpush1.msra.mxu0 0.0
        %980 = vmatprep.subr.mxu0 0.0
        %981 = vmatpush1.msra.mxu0 0.0
        %982 = vmatprep.subr.mxu0 0.0
        %983 = vmatpush1.msra.mxu0 0.0
        %984 = vmatprep.subr.mxu0 0.0
        %985 = vmatpush1.msra.mxu0 0.0
        %986 = vmatprep.subr.mxu0 0.0
        %987 = vmatpush1.msra.mxu0 0.0
        %988 = vmatprep.subr.mxu0 0.0
        %989 = vmatpush1.msra.mxu0 0.0
        %990 = vmatprep.subr.mxu0 0.0
        %991 = vmatpush1.msra.mxu0 0.0
        %992 = vmatprep.subr.mxu0 0.0
        %993 = vmatpush1.msra.mxu0 0.0
        %994 = vmatprep.subr.mxu0 0.0
        %995 = vmatpush1.msra.mxu0 0.0
        %996 = vmatprep.subr.mxu0 0.0
        %997 = vmatpush1.msra.mxu0 0.0
        %998 = vmatprep.subr.mxu0 0.0
        %999 = vmatpush1.msra.mxu0 0.0
        %1000 = vmatprep.subr.mxu0 0.0
        %1001 = vmatpush1.msra.mxu0 0.0
        %1002 = vmatprep.subr.mxu0 0.0
        %1003 = vmatpush1.msra.mxu0 0.0
        %1004 = vmatprep.subr.mxu0 0.0
        %1005 = vmatpush1.msra.mxu0 0.0
        %1006 = vmatprep.subr.mxu0 0.0
        %1007 = vmatpush1.msra.mxu0 0.0
        %1008 = vmatprep.subr.mxu0 0.0
        %1009 = vmatpush1.msra.mxu0 0.0
        %1010 = vmatprep.subr.mxu0 0.0
        %1011 = vmatpush1.msra.mxu0 0.0
        %1012 = vmatprep.subr.mxu0 0.0
        %1013 = vmatpush1.msra.mxu0 0.0
        %1014 = vmatprep.subr.mxu0 0.0
        %1015 = vmatpush1.msra.mxu0 0.0
        %1016 = vmatprep.subr.mxu0 0.0
        %1017 = vmatpush1.msra.mxu0 0.0
        %1018 = vmatprep.subr.mxu0 0.0
        %1019 = vmatpush1.msra.mxu0 0.0
        %1020 = vmatprep.subr.mxu0 0.0
        %1021 = vmatpush1.msra.mxu0 0.0
        %1022 = vmatprep.subr.mxu0 0.0
        %1023 = vmatpush1.msra.mxu0 0.0
        %1024 = vmatprep.subr.mxu0 0.0
        %1025 = vmatpush1.msra.mxu0 0.0
        %1026 = vmatprep.subr.mxu0 0.0
        %1027 = vmatpush1.msra.mxu0 0.0
        %1028 = vmatprep.mubr.f32.mxu0 0.0
        %1029 = vmatmul.mubr.f32.gmra.mrb[0].mxu0 %v958
        %v1030 = vpop.f32.mrb[0].mxu0
        %v1031 = vadd.f32 0.0, %v1030
        %v1032 = vpop.f32.mrb[0].mxu0
        %v1033 = vadd.f32 0.0, %v1032
        %1034 = vdwg.mxu0
        %v1035 = vadd.f32 %v937, %v1031
        %v1036 = vadd.f32 %v939, %v1033
        %v1037 = vld [vmem:[%s3] ss:$2 sm:$0x3]
        %s1038 = scalar_lea.vmem %s3, 1
        %v1039 = vld [vmem:[%s1038] ss:$2 sm:$0x3]
        %v1041 = vlaneseq
        %v1042 = vshrl.u32 %v1041, 7
        %v1043 = vsub.s32 0, %v1042
        %v1044 = vrot.slane %v1037, %v1043
        %v1045 = vlaneseq
        %v1046 = vshrl.u32 %v1045, 7
        %v1047 = vsub.s32 1, %v1046
        %v1048 = vrot.slane %v1037, %v1047
        %v1051 = vmul.f32 %v478, %v1044
        %v1052 = vmul.f32 %v479, %v1048
        %v1053 = vadd.f32 %v751, %v1051
        %v1054 = vadd.f32 %v752, %v1052
        %v1056 = vlaneseq
        %v1057 = vshrl.u32 %v1056, 7
        %v1058 = vsub.s32 0, %v1057
        %v1059 = vrot.slane %v1039, %v1058
        %v1060 = vlaneseq
        %v1061 = vshrl.u32 %v1060, 7
        %v1062 = vsub.s32 1, %v1061
        %v1063 = vrot.slane %v1039, %v1062
        %v1066 = vmul.f32 %v1035, %v1059
        %v1067 = vmul.f32 %v1036, %v1063
        %v1068 = vadd.f32 %v1053, %v1066
        %v1069 = vadd.f32 %v1054, %v1067
        %v1070 = vld [vmem:[%s2] sm:$0xff]
        %1072 = vset.pattern.permute.xlu0 0
        %1073 = vperm.xlu0 %1072, %v1070
        %v1074 = vpop.permute.xlu0 %1073
        %v1076 = vadd.f32 %v1068, %v1074
        %v1077 = vadd.f32 %v1069, %v1074
        %v1078 = vmax.f32 %v1076, 0.0
        %v1079 = vmax.f32 %v1077, 0.0
        %1080 = vst [vmem:[%s190] sm:$0xff] %v1078
        %1081 = vst [vmem:[%s190 + $0x8] sm:$0xff] %v1079
        %s1082 = sand.u32 %s115, 1
        %s1083 = scalar_lea.sflag [#allocation4], %s1082
        %s1084 = sand.u32 %s115, 1
        %s1085 = smul.addr %s1084, 16
        %s1086 = scalar_lea.vmem [#allocation3], %s1085
        // Predicated region
        $region37: #{tpu_custom_call.1} parent=35 // pred_check
          %p1087 = pneg %p125
        $region38: #{tpu_custom_call.1} parent=35 // pred_check_branch
          %1089 = sbr.rel (%p1087) target = $region40
        $region39: #{tpu_custom_call.1} parent=35 // pred_region
          %s1091 = ssub.s32 256, 256
          %1092 = vsyncadd %s1083, %s1091
          %s1093 = smul.addr %s18, 2
          %s1094 = smul.addr %s1093, 128
          %s1095 = scalar_lea.hbm %s4, %s1094
          %s1097 = sshll.u32 %s1086, 4
          %s1098 = int_to_ptr.vmem [resolvable:$true] %s1097
          %1100 = dma.vmem_to_hbm [thread:$0]  %s1098, 256, %s1095, %s1083
        $region40: #{tpu_custom_call.1} parent=35 // pred_fallthru
          _
      $region36: #{tpu_custom_call.1} parent=5 // pred_fallthru
        _
      %p1101 = scmp.le.s32.totalorder 2, %s13
      // Predicated region
      $region41: #{tpu_custom_call.1} parent=5 // pred_check
        %p1102 = pneg %p1101
      $region42: #{tpu_custom_call.1} parent=5 // pred_check_branch
        %1104 = sbr.rel (%p1102) target = $region44
      $region43: #{tpu_custom_call.1} parent=5 // pred_region
        %s1105 = ssub.s32 %s13, 2
        // Predicated region
        $region45: #{tpu_custom_call.1} parent=43 // pred_check
          %p1106 = pneg %p131
        $region46: #{tpu_custom_call.1} parent=43 // pred_check_branch
          %1108 = sbr.rel (%p1106) target = $region48
        $region47: #{tpu_custom_call.1} parent=43 // pred_region
          %s1109 = sand.u32 %s116, 1
          %s1110 = scalar_lea.sflag [#allocation4], %s1109
          %s1111 = sand.u32 %s116, 1
          %s1112 = smul.addr %s1111, 16
          %s1113 = scalar_lea.vmem [#allocation3], %s1112
          %1114 = dma.done %s1110, 256
        $region48: #{tpu_custom_call.1} parent=43 // pred_fallthru
          _
      $region44: #{tpu_custom_call.1} parent=5 // pred_fallthru
        _
    $region6: #{tpu_custom_call.1} parent=1 // loop_footer
      %s17 = sadd.s32 1, %s13
    $region7: #{tpu_custom_call.1} parent=1 // loop_footer_branch
      %12 = sbr.rel target = $region3
    $region8: #{tpu_custom_call.1} parent=1 // loop_exit
      _
    %1115 = vsyncpa [#allocation4], 1
    %s1116 = scalar_lea.sflag [#allocation4], 1
    %1117 = vsyncpa %s1116, 1

</llo_original>
